<compile_context>
chip_gen: v6e
topology: v6e:2x2x1
jax: 0.10.0
libtpu: 0.0.40
codegen_flags: <defaults>
</compile_context>

<pallas_src>
import jax
import jax.numpy as jnp
from jax import lax
from jax.experimental import pallas as pl
from jax.experimental.pallas import tpu as pltpu

# Model hyperparameters implied by the PyTorch module:
#   len(features) = 4, hl = 32, len(classes) = 3
N_FEATURES = 4
HL = 32
N_CLASSES = 3

# Batch (lane) tile target.  Multiple of 128.  Sweep 8K-32K per chip; 16K keeps
# double-buffered VMEM (~17 MiB incl. the lane-padded (tb,4) input block) under
# the 32 MiB scoped limit on v5e/v6e/v7x while moving ~450 KB of HBM per step.
DEFAULT_TILE_B = 16384
MIN_TILE_B = 128
_VMEM_LIMIT_BYTES = 32 * 1024 * 1024


def _round_up(n, m):
    return ((n + m - 1) // m) * m


def penguin_mlp_kernel(x_ref, w1_ref, b1_ref, w2_ref, b2_ref, w3_ref, b3_ref,
                       o_ref):
    """Fused 3-layer MLP on one (tb, F) batch tile.

    x_ref is in native (batch, features) layout; the first matmul contracts the
    feature axis of both operands (same structure as the q@k^T in flash
    attention), so the result (HL, tb) already has batch on the lane axis and
    no transpose of the big operand is ever materialized.  Weights are PyTorch
    (out, in); biases are (out, 1) columns that lane-broadcast over the batch.
    """
    h = lax.dot_general(
        w1_ref[...], x_ref[...],
        dimension_numbers=(((1,), (1,)), ((), ())),          # contract F with F
        preferred_element_type=jnp.float32) + b1_ref[...]    # (HL, tb)
    h = jnp.maximum(h, 0.0)
    h = jnp.dot(w2_ref[...], h,
                preferred_element_type=jnp.float32) + b2_ref[...]  # (HL, tb)
    h = jnp.maximum(h, 0.0)
    y = jnp.dot(w3_ref[...], h,
                preferred_element_type=jnp.float32) + b3_ref[...]  # (C,  tb)
    # The reference PyTorch forward applies relu after fc3 as well; keep it.
    o_ref[...] = jnp.maximum(y, 0.0).astype(o_ref.dtype)


def penguin_net_t(x, params, *, tile_b=DEFAULT_TILE_B):
    """Lane-dense forward.  x: (B, N_FEATURES) f32.  Returns (N_CLASSES, B).

    Preferred entry point for large batches: the output keeps batch on the
    lane axis, so downstream argmax/softmax over the 3 classes should reduce
    over axis=0 instead of paying a transpose.
    """
    w1, b1, w2, b2, w3, b3 = (params["w1"], params["b1"], params["w2"],
                              params["b2"], params["w3"], params["b3"])
    B, F = x.shape
    C = w3.shape[0]

    if B < MIN_TILE_B:
        # Tiny batch: a single full-extent block (exempt from the (8,128) rule).
        tb = B
    else:
        # Multiple of 128; cap so the grid keeps >=4 steps when B allows it
        # (v7x megacore sharding), never below 128.
        tb = min(_round_up(tile_b, 128), _round_up(pl.cdiv(B, 4), 128))
        tb = max(tb, MIN_TILE_B)
    grid = (pl.cdiv(B, tb),)   # no batch padding: last partial block is masked

    def resident(arr):
        # Whole-array block, constant index_map -> stays VMEM-resident.
        return pl.BlockSpec(arr.shape, lambda i: (0, 0))

    return pl.pallas_call(
        penguin_mlp_kernel,
        out_shape=jax.ShapeDtypeStruct((C, B), jnp.float32),
        grid=grid,
        in_specs=[
            pl.BlockSpec((tb, F), lambda i: (i, 0)),   # x: native layout, tiled over batch
            resident(w1), resident(b1),
            resident(w2), resident(b2),
            resident(w3), resident(b3),
        ],
        out_specs=pl.BlockSpec((C, tb), lambda i: (0, i)),   # lane-dense stores
        compiler_params=pltpu.CompilerParams(
            dimension_semantics=("parallel",),      # megacore sharding on v7x
            vmem_limit_bytes=_VMEM_LIMIT_BYTES),    # v5e default is only 16 MiB
    )(x, w1, b1, w2, b2, w3, b3)


def penguin_net(x, params, **kwargs):
    """PyTorch-shape-compatible forward: returns (B, N_CLASSES).

    The transpose back is wrapper-only convenience; throughput-critical callers
    should use penguin_net_t and consume the (C, B) lane-dense result directly.
    """
    return penguin_net_t(x, params, **kwargs).T


def init_params(key):
    """PyTorch-style init: uniform(+/- 1/sqrt(fan_in)) for weight and bias.

    Weights stored as (out_features, in_features) (native nn.Linear layout),
    biases as (out_features, 1) columns for lane broadcasting in the kernel.
    """
    ks = jax.random.split(key, 6)

    def linear(kw, kb, fan_in, fan_out):
        bound = 1.0 / jnp.sqrt(jnp.float32(fan_in))
        w = jax.random.uniform(kw, (fan_out, fan_in), jnp.float32, -bound, bound)
        b = jax.random.uniform(kb, (fan_out, 1), jnp.float32, -bound, bound)
        return w, b

    w1, b1 = linear(ks[0], ks[1], N_FEATURES, HL)
    w2, b2 = linear(ks[2], ks[3], HL, HL)
    w3, b3 = linear(ks[4], ks[5], HL, N_CLASSES)
    return {"w1": w1, "b1": b1, "w2": w2, "b2": b2, "w3": w3, "b3": b3}


def reference(x, p):
    h = jnp.maximum(x @ p["w1"].T + p["b1"][:, 0], 0.0)
    h = jnp.maximum(h @ p["w2"].T + p["b2"][:, 0], 0.0)
    return jnp.maximum(h @ p["w3"].T + p["b3"][:, 0], 0.0)


if __name__ == "__main__":
    key = jax.random.PRNGKey(0)
    k_param, k_x1, k_x2 = jax.random.split(key, 3)
    params = init_params(k_param)

    # Case 1: tiny batch (like x_new = [[50.4, 15.3, 20, 50]]), single full block.
    x_small = jax.random.uniform(k_x1, (2, N_FEATURES), jnp.float32, 0.0, 60.0)
    out_small = jax.block_until_ready(penguin_net(x_small, params))
    ref_small = reference(x_small, params)
    assert out_small.shape == (2, N_CLASSES)
    assert jnp.allclose(out_small, ref_small, atol=1e-3, rtol=1e-3), \
        "small-batch mismatch vs JAX ref"

    # Case 2: ragged batch -> tb=256, 4 grid steps, masked final partial block.
    # Checks the lane-dense (C, B) path directly (no wrapper transpose).
    x_big = jax.random.uniform(k_x2, (1000, N_FEATURES), jnp.float32, 0.0, 60.0)
    out_big_t = jax.block_until_ready(penguin_net_t(x_big, params))
    ref_big = reference(x_big, params)
    assert out_big_t.shape == (N_CLASSES, 1000)
    assert jnp.allclose(out_big_t, ref_big.T, atol=1e-3, rtol=1e-3), \
        "tiled-batch mismatch vs JAX ref"

    print("KERNEL_OK")
</pallas_src>

<mosaic_0001>
module attributes {stable_mosaic.version = 11 : i64} {
  func.func @penguin_mlp_kernel(%arg0: i32, %arg1: memref<2x4xf32, #tpu.memory_space<vmem>>, %arg2: memref<32x4xf32, #tpu.memory_space<vmem>>, %arg3: memref<32x1xf32, #tpu.memory_space<vmem>>, %arg4: memref<32x32xf32, #tpu.memory_space<vmem>>, %arg5: memref<32x1xf32, #tpu.memory_space<vmem>>, %arg6: memref<3x32xf32, #tpu.memory_space<vmem>>, %arg7: memref<3x1xf32, #tpu.memory_space<vmem>>, %arg8: memref<3x2xf32, #tpu.memory_space<vmem>>) attributes {dimension_semantics = [#tpu.dimension_semantics<parallel>], iteration_bounds = array<i64: 1>, scalar_prefetch = 0 : i64, scratch_operands = 0 : i64, tpu.core_type = #tpu.core_type<tc>, window_params = [{transform_indices = @transform_0, window_bounds = array<i64: 2, 4>}, {pipeline_mode = #tpu.pipeline_mode<synchronous>, transform_indices = @transform_1, window_bounds = array<i64: 32, 4>}, {pipeline_mode = #tpu.pipeline_mode<synchronous>, transform_indices = @transform_2, window_bounds = array<i64: 32, 1>}, {pipeline_mode = #tpu.pipeline_mode<synchronous>, transform_indices = @transform_3, window_bounds = array<i64: 32, 32>}, {pipeline_mode = #tpu.pipeline_mode<synchronous>, transform_indices = @transform_4, window_bounds = array<i64: 32, 1>}, {pipeline_mode = #tpu.pipeline_mode<synchronous>, transform_indices = @transform_5, window_bounds = array<i64: 3, 32>}, {pipeline_mode = #tpu.pipeline_mode<synchronous>, transform_indices = @transform_6, window_bounds = array<i64: 3, 1>}, {transform_indices = @transform_7, window_bounds = array<i64: 3, 2>}]} {
    %c0 = arith.constant 0 : index
    %c0_0 = arith.constant 0 : index
    %0 = vector.load %arg2[%c0, %c0_0] : memref<32x4xf32, #tpu.memory_space<vmem>>, vector<32x4xf32>
    %c0_1 = arith.constant 0 : index
    %c0_2 = arith.constant 0 : index
    %1 = vector.load %arg1[%c0_1, %c0_2] : memref<2x4xf32, #tpu.memory_space<vmem>>, vector<2x4xf32>
    %cst = arith.constant dense<0.000000e+00> : vector<32x2xf32>
    %2 = tpu.matmul %0, %1, %cst {dimension_numbers = #tpu.dot_dimension_numbers<[1], [1], [0], [0], [0, 0, 1, 0], [], []>} : vector<32x4xf32>, vector<2x4xf32>, vector<32x2xf32> -> vector<32x2xf32>
    %c0_3 = arith.constant 0 : index
    %c0_4 = arith.constant 0 : index
    %3 = vector.load %arg3[%c0_3, %c0_4] : memref<32x1xf32, #tpu.memory_space<vmem>>, vector<32x1xf32>
    %4 = vector.broadcast %3 : vector<32x1xf32> to vector<32x2xf32>
    %5 = arith.addf %2, %4 : vector<32x2xf32>
    %cst_5 = arith.constant 0.000000e+00 : f32
    %6 = vector.broadcast %cst_5 : f32 to vector<32x2xf32>
    %7 = arith.maximumf %5, %6 : vector<32x2xf32>
    %c0_6 = arith.constant 0 : index
    %c0_7 = arith.constant 0 : index
    %8 = vector.load %arg4[%c0_6, %c0_7] : memref<32x32xf32, #tpu.memory_space<vmem>>, vector<32x32xf32>
    %cst_8 = arith.constant dense<0.000000e+00> : vector<32x2xf32>
    %9 = tpu.matmul %8, %7, %cst_8 {dimension_numbers = #tpu.dot_dimension_numbers<[1], [0], [0], [1], [0, 0, 1, 1], [], []>} : vector<32x32xf32>, vector<32x2xf32>, vector<32x2xf32> -> vector<32x2xf32>
    %c0_9 = arith.constant 0 : index
    %c0_10 = arith.constant 0 : index
    %10 = vector.load %arg5[%c0_9, %c0_10] : memref<32x1xf32, #tpu.memory_space<vmem>>, vector<32x1xf32>
    %11 = vector.broadcast %10 : vector<32x1xf32> to vector<32x2xf32>
    %12 = arith.addf %9, %11 : vector<32x2xf32>
    %cst_11 = arith.constant 0.000000e+00 : f32
    %13 = vector.broadcast %cst_11 : f32 to vector<32x2xf32>
    %14 = arith.maximumf %12, %13 : vector<32x2xf32>
    %c0_12 = arith.constant 0 : index
    %c0_13 = arith.constant 0 : index
    %15 = vector.load %arg6[%c0_12, %c0_13] : memref<3x32xf32, #tpu.memory_space<vmem>>, vector<3x32xf32>
    %cst_14 = arith.constant dense<0.000000e+00> : vector<3x2xf32>
    %16 = tpu.matmul %15, %14, %cst_14 {dimension_numbers = #tpu.dot_dimension_numbers<[1], [0], [0], [1], [0, 0, 1, 1], [], []>} : vector<3x32xf32>, vector<32x2xf32>, vector<3x2xf32> -> vector<3x2xf32>
    %c0_15 = arith.constant 0 : index
    %c0_16 = arith.constant 0 : index
    %17 = vector.load %arg7[%c0_15, %c0_16] : memref<3x1xf32, #tpu.memory_space<vmem>>, vector<3x1xf32>
    %18 = vector.broadcast %17 : vector<3x1xf32> to vector<3x2xf32>
    %19 = arith.addf %16, %18 : vector<3x2xf32>
    %cst_17 = arith.constant 0.000000e+00 : f32
    %20 = vector.broadcast %cst_17 : f32 to vector<3x2xf32>
    %21 = arith.maximumf %19, %20 : vector<3x2xf32>
    %c0_18 = arith.constant 0 : index
    %c0_19 = arith.constant 0 : index
    %22 = vector.load %arg8[%c0_18, %c0_19] : memref<3x2xf32, #tpu.memory_space<vmem>>, vector<3x2xf32>
    tpu.vector_store %arg8[%c0_18, %c0_19], %21 {strides = array<i32>} : memref<3x2xf32, #tpu.memory_space<vmem>>, vector<3x2xf32>,
    return
  }
  func.func @transform_0(%arg0: i32) -> (i32, i32) {
    %c0_i32 = arith.constant 0 : i32
    %c0_i32_0 = arith.constant 0 : i32
    return %arg0, %c0_i32 : i32, i32
  }
  func.func @transform_1(%arg0: i32) -> (i32, i32) {
    %c0_i32 = arith.constant 0 : i32
    %c0_i32_0 = arith.constant 0 : i32
    %c0_i32_1 = arith.constant 0 : i32
    return %c0_i32, %c0_i32_0 : i32, i32
  }
  func.func @transform_2(%arg0: i32) -> (i32, i32) {
    %c0_i32 = arith.constant 0 : i32
    %c0_i32_0 = arith.constant 0 : i32
    %c0_i32_1 = arith.constant 0 : i32
    return %c0_i32, %c0_i32_0 : i32, i32
  }
  func.func @transform_3(%arg0: i32) -> (i32, i32) {
    %c0_i32 = arith.constant 0 : i32
    %c0_i32_0 = arith.constant 0 : i32
    %c0_i32_1 = arith.constant 0 : i32
    return %c0_i32, %c0_i32_0 : i32, i32
  }
  func.func @transform_4(%arg0: i32) -> (i32, i32) {
    %c0_i32 = arith.constant 0 : i32
    %c0_i32_0 = arith.constant 0 : i32
    %c0_i32_1 = arith.constant 0 : i32
    return %c0_i32, %c0_i32_0 : i32, i32
  }
  func.func @transform_5(%arg0: i32) -> (i32, i32) {
    %c0_i32 = arith.constant 0 : i32
    %c0_i32_0 = arith.constant 0 : i32
    %c0_i32_1 = arith.constant 0 : i32
    return %c0_i32, %c0_i32_0 : i32, i32
  }
  func.func @transform_6(%arg0: i32) -> (i32, i32) {
    %c0_i32 = arith.constant 0 : i32
    %c0_i32_0 = arith.constant 0 : i32
    %c0_i32_1 = arith.constant 0 : i32
    return %c0_i32, %c0_i32_0 : i32, i32
  }
  func.func @transform_7(%arg0: i32) -> (i32, i32) {
    %c0_i32 = arith.constant 0 : i32
    %c0_i32_0 = arith.constant 0 : i32
    return %c0_i32, %arg0 : i32, i32
  }
}

</mosaic_0001>

<llo_original>
// kernel: tpu_custom_call.1
$region0: #{tpu_custom_call.1}
  #allocation0 [shape = 'u32[]', space=smem, size = 0x4, offset = 0x4, fixed_abs, tag = 'smem constant byte address 0x4 - core index']
  #allocation1 [shape = 'u32[144,128]{1,0:T(1,128)}', space=vmem, size = 0x12000, scoped, tag = 'internal scratch']
  %s0 = inlined_call_operand.vmem [shape: f32[2,4], index: 0, kind: input, shape index: {}]
  %s1 = inlined_call_operand.vmem [shape: f32[32,4], index: 1, kind: input, shape index: {}]
  %s2 = inlined_call_operand.vmem [shape: f32[32,1], index: 2, kind: input, shape index: {}]
  %s3 = inlined_call_operand.vmem [shape: f32[32,32], index: 3, kind: input, shape index: {}]
  %s4 = inlined_call_operand.vmem [shape: f32[32,1], index: 4, kind: input, shape index: {}]
  %s5 = inlined_call_operand.vmem [shape: f32[3,32], index: 5, kind: input, shape index: {}]
  %s6 = inlined_call_operand.vmem [shape: f32[3,1], index: 6, kind: input, shape index: {}]
  %s7 = inlined_call_operand.vmem [shape: f32[3,2], index: 7, kind: output, shape index: {}]
  %s8 = sld [smem:[#allocation0]]
  $region38: #{tpu_custom_call.1} parent=0
    _
  %s10 = ssub.s32 1, %s8
  %s11 = scalar_select 0, %s10, %s8
  // Predicated region
  $region2: #{tpu_custom_call.1} parent=0 // pred_check
    _
  $region3: #{tpu_custom_call.1} parent=0 // pred_check_branch
    %13 = sbr.rel (0) target = $region5
  $region4: #{tpu_custom_call.1} parent=0 // pred_region
    _
  $region5: #{tpu_custom_call.1} parent=0 // pred_fallthru
    _
  // Predicated region
  $region6: #{tpu_custom_call.1} parent=0 // pred_check
    _
  $region7: #{tpu_custom_call.1} parent=0 // pred_check_branch
    %15 = sbr.rel (0) target = $region9
  $region8: #{tpu_custom_call.1} parent=0 // pred_region
    _
  $region9: #{tpu_custom_call.1} parent=0 // pred_fallthru
    _
  // Predicated region
  $region10: #{tpu_custom_call.1} parent=0 // pred_check
    _
  $region11: #{tpu_custom_call.1} parent=0 // pred_check_branch
    %17 = sbr.rel (0) target = $region13
  $region12: #{tpu_custom_call.1} parent=0 // pred_region
    _
  $region13: #{tpu_custom_call.1} parent=0 // pred_fallthru
    _
  // Predicated region
  $region14: #{tpu_custom_call.1} parent=0 // pred_check
    _
  $region15: #{tpu_custom_call.1} parent=0 // pred_check_branch
    %19 = sbr.rel (0) target = $region17
  $region16: #{tpu_custom_call.1} parent=0 // pred_region
    _
  $region17: #{tpu_custom_call.1} parent=0 // pred_fallthru
    _
  // Predicated region
  $region18: #{tpu_custom_call.1} parent=0 // pred_check
    _
  $region19: #{tpu_custom_call.1} parent=0 // pred_check_branch
    %21 = sbr.rel (0) target = $region21
  $region20: #{tpu_custom_call.1} parent=0 // pred_region
    _
  $region21: #{tpu_custom_call.1} parent=0 // pred_fallthru
    _
  // Predicated region
  $region22: #{tpu_custom_call.1} parent=0 // pred_check
    _
  $region23: #{tpu_custom_call.1} parent=0 // pred_check_branch
    %23 = sbr.rel (0) target = $region25
  $region24: #{tpu_custom_call.1} parent=0 // pred_region
    _
  $region25: #{tpu_custom_call.1} parent=0 // pred_fallthru
    _
  // Predicated region
  $region26: #{tpu_custom_call.1} parent=0 // pred_check
    _
  $region27: #{tpu_custom_call.1} parent=0 // pred_check_branch
    %25 = sbr.rel (0) target = $region29
  $region28: #{tpu_custom_call.1} parent=0 // pred_region
    _
  $region29: #{tpu_custom_call.1} parent=0 // pred_fallthru
    _
  %v26 = vld [vmem:[%s1] sm:$0xff]
  %v27 = vld [vmem:[%s1 + $0x8] sm:$0xff]
  %v28 = vld [vmem:[%s1 + $0x10] sm:$0xff]
  %v29 = vld [vmem:[%s1 + $0x18] sm:$0xff]
  %v30 = vld [vmem:[%s0] sm:$0x3]
  %v31 = vld [vmem:[%s2] sm:$0xff]
  %v32 = vld [vmem:[%s2 + $0x8] sm:$0xff]
  %v33 = vld [vmem:[%s2 + $0x10] sm:$0xff]
  %v34 = vld [vmem:[%s2 + $0x18] sm:$0xff]
  %36 = vset.pattern.permute.xlu0 0
  %37 = vperm.xlu0 %36, %v31
  %v38 = vpop.permute.xlu0 %37
  %41 = vset.pattern.permute.xlu0 0
  %42 = vperm.xlu0 %41, %v32
  %v43 = vpop.permute.xlu0 %42
  %46 = vset.pattern.permute.xlu0 0
  %47 = vperm.xlu0 %46, %v33
  %v48 = vpop.permute.xlu0 %47
  %51 = vset.pattern.permute.xlu0 0
  %52 = vperm.xlu0 %51, %v34
  %v53 = vpop.permute.xlu0 %52
  %vm55 = vcmask 31744
  %v57 = vsel %vm55, %v26, 0
  %v60 = vsel %vm55, %v27, 0
  %v63 = vsel %vm55, %v28, 0
  %v66 = vsel %vm55, %v29, 0
  %v69 = vsel %vm55, %v30, 0
  %71 = vmatprep.subr.mxu0 0.0
  %72 = vmatpush1.xpose.msra.mxu0 0.0
  %73 = vmatprep.subr.mxu0 0.0
  %74 = vmatpush1.xpose.msra.mxu0 0.0
  %75 = vmatprep.subr.mxu0 0.0
  %76 = vmatpush1.xpose.msra.mxu0 0.0
  %77 = vmatprep.subr.mxu0 0.0
  %78 = vmatpush1.xpose.msra.mxu0 0.0
  %79 = vmatprep.subr.mxu0 0.0
  %80 = vmatpush1.xpose.msra.mxu0 0.0
  %81 = vmatprep.subr.mxu0 0.0
  %82 = vmatpush1.xpose.msra.mxu0 0.0
  %83 = vmatprep.subr.mxu0 0.0
  %84 = vmatpush1.xpose.msra.mxu0 0.0
  %85 = vmatprep.subr.mxu0 0.0
  %86 = vmatpush1.xpose.msra.mxu0 0.0
  %87 = vmatprep.subr.mxu0 0.0
  %88 = vmatpush1.xpose.msra.mxu0 0.0
  %89 = vmatprep.subr.mxu0 0.0
  %90 = vmatpush1.xpose.msra.mxu0 0.0
  %91 = vmatprep.subr.mxu0 0.0
  %92 = vmatpush1.xpose.msra.mxu0 0.0
  %93 = vmatprep.subr.mxu0 0.0
  %94 = vmatpush1.xpose.msra.mxu0 0.0
  %95 = vmatprep.subr.mxu0 0.0
  %96 = vmatpush1.xpose.msra.mxu0 0.0
  %97 = vmatprep.subr.mxu0 0.0
  %98 = vmatpush1.xpose.msra.mxu0 0.0
  %99 = vmatprep.subr.mxu0 0.0
  %100 = vmatpush1.xpose.msra.mxu0 0.0
  %101 = vmatprep.subr.mxu0 0.0
  %102 = vmatpush1.xpose.msra.mxu0 %v69
  %103 = vmatprep.subr.mxu0 0.0
  %104 = vmatpush2.xpose.msra.mxu0 0.0
  %105 = vmatprep.subr.mxu0 0.0
  %106 = vmatpush2.xpose.msra.mxu0 0.0
  %107 = vmatprep.subr.mxu0 0.0
  %108 = vmatpush2.xpose.msra.mxu0 0.0
  %109 = vmatprep.subr.mxu0 0.0
  %110 = vmatpush2.xpose.msra.mxu0 0.0
  %111 = vmatprep.subr.mxu0 0.0
  %112 = vmatpush2.xpose.msra.mxu0 0.0
  %113 = vmatprep.subr.mxu0 0.0
  %114 = vmatpush2.xpose.msra.mxu0 0.0
  %115 = vmatprep.subr.mxu0 0.0
  %116 = vmatpush2.xpose.msra.mxu0 0.0
  %117 = vmatprep.subr.mxu0 0.0
  %118 = vmatpush2.xpose.msra.mxu0 0.0
  %119 = vmatprep.subr.mxu0 0.0
  %120 = vmatpush2.xpose.msra.mxu0 0.0
  %121 = vmatprep.subr.mxu0 0.0
  %122 = vmatpush2.xpose.msra.mxu0 0.0
  %123 = vmatprep.subr.mxu0 0.0
  %124 = vmatpush2.xpose.msra.mxu0 0.0
  %125 = vmatprep.subr.mxu0 0.0
  %126 = vmatpush2.xpose.msra.mxu0 0.0
  %127 = vmatprep.subr.mxu0 0.0
  %128 = vmatpush2.xpose.msra.mxu0 0.0
  %129 = vmatprep.subr.mxu0 0.0
  %130 = vmatpush2.xpose.msra.mxu0 0.0
  %131 = vmatprep.subr.mxu0 0.0
  %132 = vmatpush2.xpose.msra.mxu0 0.0
  %133 = vmatprep.subr.mxu0 0.0
  %134 = vmatpush2.xpose.msra.mxu0 0.0
  %135 = vmatprep.mubr.f32.mxu0 0.0
  %136 = vmatmul.mubr.f32.gmra.mxu0 %v57
  %v137 = vpop.f32.mrf.mxu0
  %v138 = vadd.f32 %v38, %v137
  %v139 = vpop.f32.mrf.mxu0
  %140 = vmatprep.mubr.f32.mxu0 0.0
  %141 = vmatmul.mubr.f32.gmra.mxu0 %v60
  %v142 = vpop.f32.mrf.mxu0
  %v143 = vadd.f32 %v43, %v142
  %v144 = vpop.f32.mrf.mxu0
  %145 = vmatprep.mubr.f32.mxu0 0.0
  %146 = vmatmul.mubr.f32.gmra.mxu0 %v63
  %v147 = vpop.f32.mrf.mxu0
  %v148 = vadd.f32 %v48, %v147
  %v149 = vpop.f32.mrf.mxu0
  %150 = vmatprep.mubr.f32.mxu0 0.0
  %151 = vmatmul.mubr.f32.gmra.mxu0 %v66
  %v152 = vpop.f32.mrf.mxu0
  %v153 = vadd.f32 %v53, %v152
  %v154 = vpop.f32.mrf.mxu0
  %155 = vdwg.mxu0
  %v156 = vmax.f32 %v138, 0.0
  %v157 = vmax.f32 %v143, 0.0
  %v158 = vmax.f32 %v148, 0.0
  %v159 = vmax.f32 %v153, 0.0
  %v160 = vld [vmem:[%s3] sm:$0xff]
  %v161 = vld [vmem:[%s3 + $0x8] sm:$0xff]
  %v162 = vld [vmem:[%s3 + $0x10] sm:$0xff]
  %v163 = vld [vmem:[%s3 + $0x18] sm:$0xff]
  %v164 = vld [vmem:[%s4] sm:$0xff]
  %v165 = vld [vmem:[%s4 + $0x8] sm:$0xff]
  %v166 = vld [vmem:[%s4 + $0x10] sm:$0xff]
  %v167 = vld [vmem:[%s4 + $0x18] sm:$0xff]
  %169 = vset.pattern.permute.xlu0 0
  %170 = vperm.xlu0 %169, %v164
  %v171 = vpop.permute.xlu0 %170
  %174 = vset.pattern.permute.xlu0 0
  %175 = vperm.xlu0 %174, %v165
  %v176 = vpop.permute.xlu0 %175
  %179 = vset.pattern.permute.xlu0 0
  %180 = vperm.xlu0 %179, %v166
  %v181 = vpop.permute.xlu0 %180
  %184 = vset.pattern.permute.xlu0 0
  %185 = vperm.xlu0 %184, %v167
  %v186 = vpop.permute.xlu0 %185
  %vm188 = vcmask 261120
  %v190 = vsel %vm188, %v160, 0
  %v193 = vsel %vm188, %v161, 0
  %v196 = vsel %vm188, %v162, 0
  %v199 = vsel %vm188, %v163, 0
  %201 = vmatprep.subr.mxu0 0.0
  %202 = vmatpush1.msra.mxu0 0.0
  %203 = vmatprep.subr.mxu0 0.0
  %204 = vmatpush1.msra.mxu0 0.0
  %205 = vmatprep.subr.mxu0 0.0
  %206 = vmatpush1.msra.mxu0 0.0
  %207 = vmatprep.subr.mxu0 0.0
  %208 = vmatpush1.msra.mxu0 0.0
  %209 = vmatprep.subr.mxu0 0.0
  %210 = vmatpush1.msra.mxu0 0.0
  %211 = vmatprep.subr.mxu0 0.0
  %212 = vmatpush1.msra.mxu0 0.0
  %213 = vmatprep.subr.mxu0 0.0
  %214 = vmatpush1.msra.mxu0 0.0
  %215 = vmatprep.subr.mxu0 0.0
  %216 = vmatpush1.msra.mxu0 0.0
  %217 = vmatprep.subr.mxu0 0.0
  %218 = vmatpush1.msra.mxu0 0.0
  %219 = vmatprep.subr.mxu0 0.0
  %220 = vmatpush1.msra.mxu0 0.0
  %221 = vmatprep.subr.mxu0 0.0
  %222 = vmatpush1.msra.mxu0 0.0
  %223 = vmatprep.subr.mxu0 0.0
  %224 = vmatpush1.msra.mxu0 0.0
  %225 = vmatprep.subr.mxu0 0.0
  %226 = vmatpush1.msra.mxu0 %v159
  %227 = vmatprep.subr.mxu0 0.0
  %228 = vmatpush1.msra.mxu0 %v158
  %229 = vmatprep.subr.mxu0 0.0
  %230 = vmatpush1.msra.mxu0 %v157
  %231 = vmatprep.subr.mxu0 0.0
  %232 = vmatpush1.msra.mxu0 %v156
  %233 = vmatprep.subr.mxu0 0.0
  %234 = vmatpush2.msra.mxu0 0.0
  %235 = vmatprep.subr.mxu0 0.0
  %236 = vmatpush2.msra.mxu0 0.0
  %237 = vmatprep.subr.mxu0 0.0
  %238 = vmatpush2.msra.mxu0 0.0
  %239 = vmatprep.subr.mxu0 0.0
  %240 = vmatpush2.msra.mxu0 0.0
  %241 = vmatprep.subr.mxu0 0.0
  %242 = vmatpush2.msra.mxu0 0.0
  %243 = vmatprep.subr.mxu0 0.0
  %244 = vmatpush2.msra.mxu0 0.0
  %245 = vmatprep.subr.mxu0 0.0
  %246 = vmatpush2.msra.mxu0 0.0
  %247 = vmatprep.subr.mxu0 0.0
  %248 = vmatpush2.msra.mxu0 0.0
  %249 = vmatprep.subr.mxu0 0.0
  %250 = vmatpush2.msra.mxu0 0.0
  %251 = vmatprep.subr.mxu0 0.0
  %252 = vmatpush2.msra.mxu0 0.0
  %253 = vmatprep.subr.mxu0 0.0
  %254 = vmatpush2.msra.mxu0 0.0
  %255 = vmatprep.subr.mxu0 0.0
  %256 = vmatpush2.msra.mxu0 0.0
  %257 = vmatprep.subr.mxu0 0.0
  %258 = vmatpush2.msra.mxu0 0.0
  %259 = vmatprep.subr.mxu0 0.0
  %260 = vmatpush2.msra.mxu0 0.0
  %261 = vmatprep.subr.mxu0 0.0
  %262 = vmatpush2.msra.mxu0 0.0
  %263 = vmatprep.subr.mxu0 0.0
  %264 = vmatpush2.msra.mxu0 0.0
  %265 = vmatprep.mubr.f32.mxu0 0.0
  %266 = vmatmul.mubr.f32.gmra.mxu0 %v190
  %v267 = vpop.f32.mrf.mxu0
  %v268 = vadd.f32 %v171, %v267
  %v269 = vpop.f32.mrf.mxu0
  %270 = vmatprep.mubr.f32.mxu0 0.0
  %271 = vmatmul.mubr.f32.gmra.mxu0 %v193
  %v272 = vpop.f32.mrf.mxu0
  %v273 = vadd.f32 %v176, %v272
  %v274 = vpop.f32.mrf.mxu0
  %275 = vmatprep.mubr.f32.mxu0 0.0
  %276 = vmatmul.mubr.f32.gmra.mxu0 %v196
  %v277 = vpop.f32.mrf.mxu0
  %v278 = vadd.f32 %v181, %v277
  %v279 = vpop.f32.mrf.mxu0
  %280 = vmatprep.mubr.f32.mxu0 0.0
  %281 = vmatmul.mubr.f32.gmra.mxu0 %v199
  %v282 = vpop.f32.mrf.mxu0
  %v283 = vadd.f32 %v186, %v282
  %v284 = vpop.f32.mrf.mxu0
  %285 = vdwg.mxu0
  %v286 = vmax.f32 %v268, 0.0
  %v287 = vmax.f32 %v273, 0.0
  %v288 = vmax.f32 %v278, 0.0
  %v289 = vmax.f32 %v283, 0.0
  %v290 = vld [vmem:[%s5] sm:$0x7]
  %v291 = vld [vmem:[%s6] sm:$0x7]
  %293 = vset.pattern.permute.xlu0 0
  %294 = vperm.xlu0 %293, %v291
  %v295 = vpop.permute.xlu0 %294
  %v298 = vsel %vm188, %v290, 0
  %300 = vmatprep.subr.mxu0 0.0
  %301 = vmatpush1.msra.mxu0 0.0
  %302 = vmatprep.subr.mxu0 0.0
  %303 = vmatpush1.msra.mxu0 0.0
  %304 = vmatprep.subr.mxu0 0.0
  %305 = vmatpush1.msra.mxu0 0.0
  %306 = vmatprep.subr.mxu0 0.0
  %307 = vmatpush1.msra.mxu0 0.0
  %308 = vmatprep.subr.mxu0 0.0
  %309 = vmatpush1.msra.mxu0 0.0
  %310 = vmatprep.subr.mxu0 0.0
  %311 = vmatpush1.msra.mxu0 0.0
  %312 = vmatprep.subr.mxu0 0.0
  %313 = vmatpush1.msra.mxu0 0.0
  %314 = vmatprep.subr.mxu0 0.0
  %315 = vmatpush1.msra.mxu0 0.0
  %316 = vmatprep.subr.mxu0 0.0
  %317 = vmatpush1.msra.mxu0 0.0
  %318 = vmatprep.subr.mxu0 0.0
  %319 = vmatpush1.msra.mxu0 0.0
  %320 = vmatprep.subr.mxu0 0.0
  %321 = vmatpush1.msra.mxu0 0.0
  %322 = vmatprep.subr.mxu0 0.0
  %323 = vmatpush1.msra.mxu0 0.0
  %324 = vmatprep.subr.mxu0 0.0
  %325 = vmatpush1.msra.mxu0 %v289
  %326 = vmatprep.subr.mxu0 0.0
  %327 = vmatpush1.msra.mxu0 %v288
  %328 = vmatprep.subr.mxu0 0.0
  %329 = vmatpush1.msra.mxu0 %v287
  %330 = vmatprep.subr.mxu0 0.0
  %331 = vmatpush1.msra.mxu0 %v286
  %332 = vmatprep.subr.mxu0 0.0
  %333 = vmatpush2.msra.mxu0 0.0
  %334 = vmatprep.subr.mxu0 0.0
  %335 = vmatpush2.msra.mxu0 0.0
  %336 = vmatprep.subr.mxu0 0.0
  %337 = vmatpush2.msra.mxu0 0.0
  %338 = vmatprep.subr.mxu0 0.0
  %339 = vmatpush2.msra.mxu0 0.0
  %340 = vmatprep.subr.mxu0 0.0
  %341 = vmatpush2.msra.mxu0 0.0
  %342 = vmatprep.subr.mxu0 0.0
  %343 = vmatpush2.msra.mxu0 0.0
  %344 = vmatprep.subr.mxu0 0.0
  %345 = vmatpush2.msra.mxu0 0.0
  %346 = vmatprep.subr.mxu0 0.0
  %347 = vmatpush2.msra.mxu0 0.0
  %348 = vmatprep.subr.mxu0 0.0
  %349 = vmatpush2.msra.mxu0 0.0
  %350 = vmatprep.subr.mxu0 0.0
  %351 = vmatpush2.msra.mxu0 0.0
  %352 = vmatprep.subr.mxu0 0.0
  %353 = vmatpush2.msra.mxu0 0.0
  %354 = vmatprep.subr.mxu0 0.0
  %355 = vmatpush2.msra.mxu0 0.0
  %356 = vmatprep.subr.mxu0 0.0
  %357 = vmatpush2.msra.mxu0 0.0
  %358 = vmatprep.subr.mxu0 0.0
  %359 = vmatpush2.msra.mxu0 0.0
  %360 = vmatprep.subr.mxu0 0.0
  %361 = vmatpush2.msra.mxu0 0.0
  %362 = vmatprep.subr.mxu0 0.0
  %363 = vmatpush2.msra.mxu0 0.0
  %364 = vmatprep.mubr.f32.mxu0 0.0
  %365 = vmatmul.mubr.f32.gmra.mxu0 %v298
  %v366 = vpop.f32.mrf.mxu0
  %v367 = vadd.f32 %v295, %v366
  %v368 = vpop.f32.mrf.mxu0
  %369 = vdwg.mxu0
  %v370 = vmax.f32 %v367, 0.0
  %vm371 = vcmask 10240
  %372 = vst.msk [vmem:[%s7] sm:$0x7] %vm371, %v370
  // Predicated region
  $region30: #{tpu_custom_call.1} parent=0 // pred_check
    _
  $region31: #{tpu_custom_call.1} parent=0 // pred_check_branch
    %374 = sbr.rel (0) target = $region33
  $region32: #{tpu_custom_call.1} parent=0 // pred_region
    _
  $region33: #{tpu_custom_call.1} parent=0 // pred_fallthru
    _
  // Predicated region
  $region34: #{tpu_custom_call.1} parent=0 // pred_check
    _
  $region35: #{tpu_custom_call.1} parent=0 // pred_check_branch
    %376 = sbr.rel (0) target = $region37
  $region36: #{tpu_custom_call.1} parent=0 // pred_region
    _
  $region37: #{tpu_custom_call.1} parent=0 // pred_fallthru
    _

</llo_original>
